<compile_context>
chip_gen: v5e
topology: v5e:2x2
jax: 0.10.0
libtpu: 0.0.40
codegen_flags: <defaults>
</compile_context>

<pallas_src>
import numpy as np
import jax
import jax.numpy as jnp
from jax.experimental import pallas as pl
from jax.experimental.pallas import tpu as pltpu

BN_EPS = 1e-5


def _as_pair(v):
    if isinstance(v, (tuple, list)):
        return int(v[0]), int(v[1])
    return int(v), int(v)


def _round_up(v, m):
    return -(-int(v) // int(m)) * int(m)


def _vmem_budget_bytes():
    """Generation-aware scoped-VMEM budget: ~3/4 of physical, capped at 96 MiB."""
    cap = 64 * 1024 * 1024
    try:
        cap = int(getattr(pltpu.get_tpu_info(), "vmem_capacity_bytes", cap)) or cap
    except Exception:
        pass
    return int(min(max(cap * 3 // 4, 32 * 1024 * 1024), 96 * 1024 * 1024))


# --------------------------- Pallas kernels ---------------------------

def _sq_kernel(wt_ref, pt_ref, sq_ref):
    # wt_ref: [Cp_pad, Ck] resident weights; pt_ref: [Ck, tm] M-tiled patches;
    # sq_ref: [Cp_pad, 1] per-core resident sum-of-squares accumulator (P3 pattern).
    y = jnp.dot(wt_ref[...], pt_ref[...], preferred_element_type=jnp.float32)

    @pl.when(pl.program_id(1) == 0)
    def _init():
        sq_ref[...] = jnp.zeros_like(sq_ref)

    sq_ref[...] += jnp.sum(y * y, axis=1, keepdims=True)


def _apply_kernel(wt_ref, scale_ref, shift_ref, pt_ref, o_ref):
    # Recompute the tile matmul (cheaper than an HBM round trip of the pre-BN activation)
    # and apply folded BatchNorm (scale/shift) + ReLU with lane-dense stores.
    y = jnp.dot(wt_ref[...], pt_ref[...], preferred_element_type=jnp.float32)
    o_ref[...] = jnp.maximum(y * scale_ref[...] + shift_ref[...], 0.0).astype(o_ref.dtype)


# --------------------------- wrapper ---------------------------

def generator_block(x, w, b, gamma, beta, stride, *, compute_dtype=jnp.bfloat16,
                    tile_m=None, out_dtype=jnp.bfloat16):
    """GeneratorBlock forward: ConvTranspose2d(stride) -> BatchNorm2d(batch stats) -> ReLU.

    x: [N, C_in, H, W] (NCHW); w: [C_in, C_out, Kh, Kw] (PyTorch ConvTranspose2d layout);
    b: [C_out] conv bias (ignored: it cancels exactly under training-mode BatchNorm);
    gamma/beta: [C_out] BatchNorm affine parameters.
    """
    del b  # ConvTranspose bias cancels exactly under training-mode BN (the mean removes it).
    # NOTE: stats correctness relies on (a) the bias being dropped and (b) padded kernel
    # taps / padded M columns / padded Cp rows being *exact zeros* in compute_dtype.
    # Do not add any pre-BN bias or epsilon inside the kernels.

    N, C_in, H, W = map(int, x.shape)
    _, C_out, Kh, Kw = map(int, w.shape)
    sh, sw = _as_pair(stride)
    H_out = (H - 1) * sh + Kh
    W_out = (W - 1) * sw + Kw

    # Sub-pixel decomposition: pad the kernel up to a multiple of the stride so every
    # output-pixel phase (r, c) uses a uniform (Rh x Rw) sub-kernel; padded taps are zero
    # and the corresponding extra output rows/cols are exactly zero and cropped.
    Rh = -(-Kh // sh)               # ceil(Kh / sh)
    Rw = -(-Kw // sw)
    Kph, Kpw = Rh * sh, Rw * sw
    s2 = sh * sw
    Cp = C_out * s2                 # fused (channel, phase) rows
    Cp_pad = _round_up(Cp, 16)      # sublane-aligned rows (16 covers bf16 packing)
    Ck = C_in * Rh * Rw             # contraction size
    Hc = H + Rh - 1                 # coarse output grid (padded output = Hc*sh x Wc*sw)
    Wc = W + Rw - 1

    in_item = np.dtype(compute_dtype).itemsize
    out_item = np.dtype(out_dtype).itemsize

    # ---- cast to compute dtype BEFORE the layout shuffles (halves wrapper HBM traffic) ----
    x_cd = x.astype(compute_dtype)
    w_cd = w.astype(compute_dtype)

    # Weight matrix: Wt[oc*s2 + r*sw + c, ic*Rh*Rw + j*Rw + l] = w[ic, oc, r + sh*j, c + sw*l]
    w_p = jnp.pad(w_cd, ((0, 0), (0, 0), (0, Kph - Kh), (0, Kpw - Kw)))
    Wt = (w_p.reshape(C_in, C_out, Rh, sh, Rw, sw)
             .transpose(1, 3, 5, 0, 2, 4)
             .reshape(Cp, Ck))
    Wt = jnp.pad(Wt, ((0, Cp_pad - Cp), (0, 0)))

    # Patch matrix (transposed, lane-dense columns = coarse positions):
    #   Pt[(ic, j, l), (n, q, p)] = xpad[n, ic, q + Rh-1 - j, p + Rw-1 - l]
    xpad = jnp.pad(x_cd, ((0, 0), (0, 0), (Rh - 1, Rh - 1), (Rw - 1, Rw - 1)))
    shifts = [xpad[:, :, Rh - 1 - j:Rh - 1 - j + Hc, Rw - 1 - l:Rw - 1 - l + Wc]
              for j in range(Rh) for l in range(Rw)]
    Pt = (jnp.stack(shifts, axis=2)              # [N, C_in, Rh*Rw, Hc, Wc]
             .transpose(1, 2, 0, 3, 4)
             .reshape(Ck, N * Hc * Wc))
    Mc = N * Hc * Wc

    # ---- generation-aware VMEM budget + M-tile size (minimize last-tile padding) ----
    vmem_limit = _vmem_budget_bytes()
    m_cap = max(128, _round_up(Mc, 128))
    if tile_m is None:
        per_col = 2 * Ck * in_item + 2 * Cp_pad * out_item + 2 * Cp_pad * 4  # tiles + f32 temps
        fixed = 2 * Cp_pad * Ck * in_item + (1 << 20)                        # weights (x2) + slack
        avail = (vmem_limit * 85) // 100 - fixed
        tm = min(2048, max(128, (avail // per_col) if avail > 0 else 128))
        tm = (tm // 128) * 128
    else:
        tm = max(128, _round_up(int(tile_m), 128))
    tm = min(tm, m_cap)
    n_tiles = -(-Mc // tm)
    tm = max(128, _round_up(-(-Mc // n_tiles), 128))   # same tile count, less padding
    n_tiles = -(-Mc // tm)

    # 2-way core split of the stats pass (uses both TensorCores on v7x); skip for 1 tile.
    n_core = 2 if n_tiles >= 2 else 1
    n_m2 = -(-n_tiles // n_core)
    M_padA = n_core * n_m2 * tm        # padded zero columns: no effect on the statistics
    M_outB = n_tiles * tm
    Pt = jnp.pad(Pt, ((0, 0), (0, M_padA - Mc)))

    matmul_flops_a = 2 * Cp_pad * Ck * M_padA
    matmul_flops_b = 2 * Cp_pad * Ck * M_outB

    # ---- pass A: conv (matmul) + per-row sum-of-squares (per-core partial accumulators) ----
    sq_parts = pl.pallas_call(
        _sq_kernel,
        grid=(n_core, n_m2),
        in_specs=[
            pl.BlockSpec((Cp_pad, Ck), lambda c, m: (0, 0)),         # weights: VMEM-resident
            pl.BlockSpec((Ck, tm), lambda c, m: (0, c * n_m2 + m)),  # patches: M-tiled
        ],
        out_specs=pl.BlockSpec((None, Cp_pad, 1), lambda c, m: (c, 0, 0)),
        out_shape=jax.ShapeDtypeStruct((n_core, Cp_pad, 1), jnp.float32),
        compiler_params=pltpu.CompilerParams(
            dimension_semantics=("parallel", "arbitrary"),
            vmem_limit_bytes=vmem_limit),
        cost_estimate=pl.CostEstimate(
            flops=matmul_flops_a + 3 * Cp_pad * M_padA,
            transcendentals=0,
            bytes_accessed=(Cp_pad * Ck + Ck * M_padA) * in_item + n_core * Cp_pad * 4),
    )(Wt, Pt)

    # ---- fold batch statistics (per true channel, over all N*H_out*W_out pixels) ----
    # Per-row sums are analytic: every Pt row sums to the per-channel sum of x (each x
    # element appears exactly once per (j, l) shift; padding contributes zeros), hence
    #   sum_m y[i, m] = Wt[i, :] @ repeat(sum_nhw(x), Rh*Rw).
    count = float(N * H_out * W_out)
    xsum = jnp.sum(x_cd.astype(jnp.float32), axis=(0, 2, 3))            # [C_in]
    pt_rowsum = jnp.repeat(xsum, Rh * Rw)                                # [Ck]
    sum_rows = Wt[:Cp].astype(jnp.float32) @ pt_rowsum                   # [Cp]
    sq_rows = jnp.sum(sq_parts[:, :Cp, 0], axis=0)                       # [Cp]
    ch_sum = jnp.sum(sum_rows.reshape(C_out, s2), axis=1)
    ch_sq = jnp.sum(sq_rows.reshape(C_out, s2), axis=1)
    mean = ch_sum / count
    # E[y^2] - E[y]^2 can cancel for near-constant channels; clamped >= 0 (no NaN), which is
    # acceptable for GAN activations (a shifted / Gram formulation would be safer there).
    var = jnp.maximum(ch_sq / count - mean * mean, 0.0)
    scale_c = gamma.astype(jnp.float32) * jax.lax.rsqrt(var + BN_EPS)
    shift_c = beta.astype(jnp.float32) - mean * scale_c
    scale_rows = jnp.pad(jnp.repeat(scale_c, s2), (0, Cp_pad - Cp)).reshape(Cp_pad, 1)
    shift_rows = jnp.pad(jnp.repeat(shift_c, s2), (0, Cp_pad - Cp)).reshape(Cp_pad, 1)

    # ---- pass B: recompute tile matmul, apply folded BN + ReLU (lane-dense bf16 stores) ----
    out_rows = pl.pallas_call(
        _apply_kernel,
        grid=(n_tiles,),
        in_specs=[
            pl.BlockSpec((Cp_pad, Ck), lambda m: (0, 0)),
            pl.BlockSpec((Cp_pad, 1), lambda m: (0, 0)),
            pl.BlockSpec((Cp_pad, 1), lambda m: (0, 0)),
            pl.BlockSpec((Ck, tm), lambda m: (0, m)),
        ],
        out_specs=pl.BlockSpec((Cp_pad, tm), lambda m: (0, m)),
        out_shape=jax.ShapeDtypeStruct((Cp_pad, M_outB), out_dtype),
        compiler_params=pltpu.CompilerParams(
            dimension_semantics=("parallel",), vmem_limit_bytes=vmem_limit),
        cost_estimate=pl.CostEstimate(
            flops=matmul_flops_b + 3 * Cp_pad * M_outB,
            transcendentals=0,
            bytes_accessed=(Cp_pad * Ck + Ck * M_outB) * in_item
                           + Cp_pad * M_outB * out_item + 4 * Cp_pad * 4),
    )(Wt, scale_rows, shift_rows, Pt)

    # ---- pixel-shuffle the fused (channel, phase) rows back to NCHW and crop ----
    out = (out_rows[:Cp, :Mc]
           .reshape(C_out, sh, sw, N, Hc, Wc)
           .transpose(3, 0, 4, 1, 5, 2)
           .reshape(N, C_out, Hc * sh, Wc * sw)[:, :, :H_out, :W_out])
    return out


# --------------------------- reference + test ---------------------------

def _numpy_reference(x, w, b, gamma, beta, stride):
    """Scatter-based reference: torch ConvTranspose2d + BatchNorm2d(train) + ReLU."""
    x = np.asarray(x, np.float64)
    w = np.asarray(w, np.float64)
    sh, sw = _as_pair(stride)
    N, C_in, H, W = x.shape
    _, C_out, Kh, Kw = w.shape
    H_out = (H - 1) * sh + Kh
    W_out = (W - 1) * sw + Kw
    y = np.zeros((N, C_out, H_out, W_out), np.float64)
    for kh in range(Kh):
        for kw in range(Kw):
            contrib = np.einsum("nihw,io->nohw", x, w[:, :, kh, kw])
            y[:, :, kh:kh + (H - 1) * sh + 1:sh,
                 kw:kw + (W - 1) * sw + 1:sw] += contrib
    y += np.asarray(b, np.float64).reshape(1, C_out, 1, 1)
    mean = y.mean(axis=(0, 2, 3), keepdims=True)
    var = y.var(axis=(0, 2, 3), keepdims=True)          # biased
    y = (y - mean) / np.sqrt(var + BN_EPS)
    y = y * np.asarray(gamma, np.float64).reshape(1, C_out, 1, 1) \
          + np.asarray(beta, np.float64).reshape(1, C_out, 1, 1)
    return np.maximum(y, 0.0)


def _run_case(key, *, N, C_in, H, W, C_out, kernel, stride, compute_dtype,
              rtol, atol, tile_m=None, out_dtype=jnp.bfloat16):
    Kh, Kw = _as_pair(kernel)
    sh, sw = _as_pair(stride)
    kx, kw_, kb, kg, kbt = jax.random.split(key, 5)
    x = jax.random.normal(kx, (N, C_in, H, W), jnp.float32)
    w = jax.random.normal(kw_, (C_in, C_out, Kh, Kw), jnp.float32) * 0.1
    b = jax.random.normal(kb, (C_out,), jnp.float32) * 0.1
    gamma = 1.0 + 0.1 * jax.random.normal(kg, (C_out,), jnp.float32)
    beta = 0.1 * jax.random.normal(kbt, (C_out,), jnp.float32)

    out = generator_block(x, w, b, gamma, beta, stride,
                          compute_dtype=compute_dtype, tile_m=tile_m,
                          out_dtype=out_dtype)
    out = jax.block_until_ready(out)

    assert out.shape == (N, C_out, (H - 1) * sh + Kh, (W - 1) * sw + Kw)
    ref = _numpy_reference(x, w, b, gamma, beta, stride)
    got = np.asarray(jnp.asarray(out, jnp.float32), np.float64)
    np.testing.assert_allclose(got, ref, rtol=rtol, atol=atol)


if __name__ == "__main__":
    root = jax.random.PRNGKey(0)
    k1, k2, k3, k4, k5 = jax.random.split(root, 5)

    # Square kernel with overlapping taps (K=4, stride=2), f32 compute + f32 output (tight check).
    _run_case(k1, N=2, C_in=4, H=8, W=8, C_out=8, kernel=4, stride=2,
              compute_dtype=jnp.float32, out_dtype=jnp.float32, rtol=1e-4, atol=1e-4)
    # Same block with bf16 MXU operands + bf16 output and a small forced M-tile: multi-tile
    # grid plus the 2-way core-split stats accumulation.
    _run_case(k2, N=2, C_in=4, H=8, W=8, C_out=8, kernel=4, stride=2,
              compute_dtype=jnp.bfloat16, rtol=3e-2, atol=3e-2, tile_m=128)
    # Generator-style block (kernel == stride, asymmetric), like transconv0 (4,1)/(4,1):
    # sub-pixel path with zero im2col inflation.
    _run_case(k3, N=2, C_in=8, H=2, W=6, C_out=16, kernel=(4, 1), stride=(4, 1),
              compute_dtype=jnp.bfloat16, rtol=3e-2, atol=3e-2)
    # Kernel not a multiple of the stride (padded-phase + crop path), f32 tight check.
    _run_case(k4, N=1, C_in=3, H=5, W=4, C_out=5, kernel=3, stride=2,
              compute_dtype=jnp.float32, out_dtype=jnp.float32, rtol=1e-4, atol=1e-4)
    # Odd tile count (3) with the 2-way core split: exercises the zero-padded stats tile.
    _run_case(k5, N=2, C_in=4, H=12, W=12, C_out=8, kernel=4, stride=2,
              compute_dtype=jnp.bfloat16, rtol=3e-2, atol=3e-2, tile_m=128)

    print("KERNEL_OK")
</pallas_src>

<mosaic_0001>
module attributes {stable_mosaic.version = 11 : i64} {
  func.func @_sq_kernel(%arg0: i32, %arg1: i32, %arg2: memref<32x16xf32, #tpu.memory_space<vmem>>, %arg3: memref<16x256xf32, #tpu.memory_space<vmem>>, %arg4: memref<1x32x1xf32, #tpu.memory_space<vmem>>) attributes {dimension_semantics = [#tpu.dimension_semantics<parallel>, #tpu.dimension_semantics<arbitrary>], iteration_bounds = array<i64: 1, 1>, scalar_prefetch = 0 : i64, scratch_operands = 0 : i64, tpu.core_type = #tpu.core_type<tc>, window_params = [{pipeline_mode = #tpu.pipeline_mode<synchronous>, transform_indices = @transform_0, window_bounds = array<i64: 32, 16>}, {transform_indices = @transform_1, window_bounds = array<i64: 16, 256>}, {transform_indices = @transform_2, window_bounds = array<i64: 1, 32, 1>}]} {
    %c0 = arith.constant 0 : index
    %c0_0 = arith.constant 0 : index
    %0 = vector.load %arg2[%c0, %c0_0] : memref<32x16xf32, #tpu.memory_space<vmem>>, vector<32x16xf32>
    %c0_1 = arith.constant 0 : index
    %c0_2 = arith.constant 0 : index
    %1 = vector.load %arg3[%c0_1, %c0_2] : memref<16x256xf32, #tpu.memory_space<vmem>>, vector<16x256xf32>
    %cst = arith.constant dense<0.000000e+00> : vector<32x256xf32>
    %2 = tpu.matmul %0, %1, %cst {dimension_numbers = #tpu.dot_dimension_numbers<[1], [0], [0], [1], [0, 0, 1, 1], [], []>} : vector<32x16xf32>, vector<16x256xf32>, vector<32x256xf32> -> vector<32x256xf32>
    %c0_i32 = arith.constant 0 : i32
    %3 = arith.cmpi eq, %arg1, %c0_i32 : i32
    %4 = arith.extui %3 : i1 to i32
    %c0_i32_3 = arith.constant 0 : i32
    %5 = arith.cmpi ne, %4, %c0_i32_3 : i32
    scf.if %5 {
      %cst_11 = arith.constant 0.000000e+00 : f32
      %15 = vector.broadcast %cst_11 : f32 to vector<32x1xf32>
      %c0_12 = arith.constant 0 : index
      %c0_13 = arith.constant 0 : index
      %c0_14 = arith.constant 0 : index
      %16 = vector.load %arg4[%c0_12, %c0_13, %c0_14] : memref<1x32x1xf32, #tpu.memory_space<vmem>>, vector<1x32x1xf32>
      %17 = vector.shape_cast %16 : vector<1x32x1xf32> to vector<32x1xf32>
      %18 = vector.shape_cast %15 : vector<32x1xf32> to vector<1x32x1xf32>
      tpu.vector_store %arg4[%c0_12, %c0_13, %c0_14], %18 {strides = array<i32>} : memref<1x32x1xf32, #tpu.memory_space<vmem>>, vector<1x32x1xf32>,
    } else {
    }
    %c0_4 = arith.constant 0 : index
    %c0_5 = arith.constant 0 : index
    %c0_6 = arith.constant 0 : index
    %6 = vector.load %arg4[%c0_4, %c0_5, %c0_6] : memref<1x32x1xf32, #tpu.memory_space<vmem>>, vector<1x32x1xf32>
    %7 = vector.shape_cast %6 : vector<1x32x1xf32> to vector<32x1xf32>
    %8 = arith.mulf %2, %2 : vector<32x256xf32>
    %cst_7 = arith.constant dense<0.000000e+00> : vector<32xf32>
    %9 = vector.multi_reduction <add>, %8, %cst_7 [1] : vector<32x256xf32> to vector<32xf32>
    %10 = vector.shape_cast %9 : vector<32xf32> to vector<32x1xf32>
    %11 = arith.addf %7, %10 : vector<32x1xf32>
    %c0_8 = arith.constant 0 : index
    %c0_9 = arith.constant 0 : index
    %c0_10 = arith.constant 0 : index
    %12 = vector.load %arg4[%c0_8, %c0_9, %c0_10] : memref<1x32x1xf32, #tpu.memory_space<vmem>>, vector<1x32x1xf32>
    %13 = vector.shape_cast %12 : vector<1x32x1xf32> to vector<32x1xf32>
    %14 = vector.shape_cast %11 : vector<32x1xf32> to vector<1x32x1xf32>
    tpu.vector_store %arg4[%c0_8, %c0_9, %c0_10], %14 {strides = array<i32>} : memref<1x32x1xf32, #tpu.memory_space<vmem>>, vector<1x32x1xf32>,
    return
  }
  func.func @transform_0(%arg0: i32, %arg1: i32) -> (i32, i32) {
    %c0_i32 = arith.constant 0 : i32
    %c0_i32_0 = arith.constant 0 : i32
    %c0_i32_1 = arith.constant 0 : i32
    return %c0_i32, %c0_i32_0 : i32, i32
  }
  func.func @transform_1(%arg0: i32, %arg1: i32) -> (i32, i32) {
    %c1_i32 = arith.constant 1 : i32
    %0 = arith.muli %arg0, %c1_i32 : i32
    %1 = arith.addi %0, %arg1 : i32
    %c0_i32 = arith.constant 0 : i32
    %c0_i32_0 = arith.constant 0 : i32
    return %c0_i32, %1 : i32, i32
  }
  func.func @transform_2(%arg0: i32, %arg1: i32) -> (i32, i32, i32) {
    %c0_i32 = arith.constant 0 : i32
    %c0_i32_0 = arith.constant 0 : i32
    %c0_i32_1 = arith.constant 0 : i32
    return %arg0, %c0_i32, %c0_i32_0 : i32, i32, i32
  }
}

</mosaic_0001>

<llo_original>
// kernel: tpu_custom_call.1
$region0: #{tpu_custom_call.1}
  #allocation0 [shape = 'u32[]', space=smem, size = 0x4, offset = 0x4, fixed_abs, tag = 'smem constant byte address 0x4 - core index']
  #allocation1 [shape = 'u32[72,128]{1,0:T(1,128)}', space=vmem, size = 0x9000, scoped, tag = 'internal scratch']
  %s0 = inlined_call_operand.vmem [shape: f32[32,16], index: 0, kind: input, shape index: {}]
  %s1 = inlined_call_operand.vmem [shape: f32[16,256], index: 1, kind: input, shape index: {}]
  %s2 = inlined_call_operand.vmem [shape: f32[1,32,1], index: 2, kind: output, shape index: {}]
  %s3 = sld [smem:[#allocation0]]
  $region22: #{tpu_custom_call.1} parent=0
    _
  %s5 = ssub.s32 1, %s3
  %s6 = scalar_select 0, %s5, %s3
  // Predicated region
  $region2: #{tpu_custom_call.1} parent=0 // pred_check
    _
  $region3: #{tpu_custom_call.1} parent=0 // pred_check_branch
    %8 = sbr.rel (0) target = $region5
  $region4: #{tpu_custom_call.1} parent=0 // pred_region
    _
  $region5: #{tpu_custom_call.1} parent=0 // pred_fallthru
    _
  // Predicated region
  $region6: #{tpu_custom_call.1} parent=0 // pred_check
    _
  $region7: #{tpu_custom_call.1} parent=0 // pred_check_branch
    %10 = sbr.rel (0) target = $region9
  $region8: #{tpu_custom_call.1} parent=0 // pred_region
    %s11 = sadd.s32 0, 0
    %s12 = smul.u32 2, %s11
    %p13 = scmp.lt.s32.totalorder %s12, 1
    %s14 = scalar_select %p13, %s12, 1
    %s15 = smul.addr %s14, 8
    %s16 = scalar_lea.vmem %s1, %s15
    %s17 = sadd.s32 0, 0
    %s18 = smul.u32 2, %s17
  $region9: #{tpu_custom_call.1} parent=0 // pred_fallthru
    _
  %s19 = sadd.s32 0, 0
  %s20 = smul.u32 2, %s19
  %p21 = scmp.lt.s32.totalorder %s20, 1
  %s22 = scalar_select %p21, %s20, 1
  %s23 = smul.addr %s22, 8
  %s24 = scalar_lea.vmem %s1, %s23
  %s25 = sadd.s32 0, 0
  %s26 = smul.u32 2, %s25
  %p27 = scmp.lt.s32.totalorder %s26, 1
  %s28 = scalar_select %p27, %s26, 1
  %s29 = smul.addr %s28, 8
  %s30 = scalar_lea.vmem %s1, %s29
  %s31 = sadd.s32 0, 0
  %s32 = smul.u32 2, %s31
  %v33 = vld [vmem:[%s0] sm:$0xff]
  %v34 = vld [vmem:[%s0 + $0x8] sm:$0xff]
  %v35 = vld [vmem:[%s0 + $0x10] sm:$0xff]
  %v36 = vld [vmem:[%s0 + $0x18] sm:$0xff]
  %v37 = vld [vmem:[%s30] sm:$0xff]
  %v38 = vld [vmem:[%s30 + $0x8] sm:$0xff]
  %v39 = vld [vmem:[%s30 + $0x10] sm:$0xff]
  %v40 = vld [vmem:[%s30 + $0x18] sm:$0xff]
  %vm41 = vcmask 130048
  %v43 = vsel %vm41, %v33, 0
  %v46 = vsel %vm41, %v34, 0
  %v49 = vsel %vm41, %v35, 0
  %v52 = vsel %vm41, %v36, 0
  %54 = vmatpush.msra.mxu0 0.0
  %55 = vmatpush.msra.mxu0 0.0
  %56 = vmatpush.msra.mxu0 0.0
  %57 = vmatpush.msra.mxu0 0.0
  %58 = vmatpush.msra.mxu0 0.0
  %59 = vmatpush.msra.mxu0 0.0
  %60 = vmatpush.msra.mxu0 0.0
  %61 = vmatpush.msra.mxu0 0.0
  %62 = vmatpush.msra.mxu0 0.0
  %63 = vmatpush.msra.mxu0 0.0
  %64 = vmatpush.msra.mxu0 0.0
  %65 = vmatpush.msra.mxu0 0.0
  %66 = vmatpush.msra.mxu0 0.0
  %67 = vmatpush.msra.mxu0 0.0
  %68 = vmatpush.msra.mxu0 %v39
  %69 = vmatpush.msra.mxu0 %v37
  %70 = vmatmul.f32.gmra.mxu0 %v43
  %v71 = vpop.f32.mrf.mxu0
  %v72 = vadd.f32 0.0, %v71
  %73 = vmatmul.f32.gmra.mxu0 %v46
  %v74 = vpop.f32.mrf.mxu0
  %v75 = vadd.f32 0.0, %v74
  %76 = vmatmul.f32.gmra.mxu0 %v49
  %v77 = vpop.f32.mrf.mxu0
  %v78 = vadd.f32 0.0, %v77
  %79 = vmatmul.f32.gmra.mxu0 %v52
  %v80 = vpop.f32.mrf.mxu0
  %v81 = vadd.f32 0.0, %v80
  %82 = vdwg.mxu0
  %83 = vmatpush.msra.mxu0 0.0
  %84 = vmatpush.msra.mxu0 0.0
  %85 = vmatpush.msra.mxu0 0.0
  %86 = vmatpush.msra.mxu0 0.0
  %87 = vmatpush.msra.mxu0 0.0
  %88 = vmatpush.msra.mxu0 0.0
  %89 = vmatpush.msra.mxu0 0.0
  %90 = vmatpush.msra.mxu0 0.0
  %91 = vmatpush.msra.mxu0 0.0
  %92 = vmatpush.msra.mxu0 0.0
  %93 = vmatpush.msra.mxu0 0.0
  %94 = vmatpush.msra.mxu0 0.0
  %95 = vmatpush.msra.mxu0 0.0
  %96 = vmatpush.msra.mxu0 0.0
  %97 = vmatpush.msra.mxu0 %v40
  %98 = vmatpush.msra.mxu0 %v38
  %99 = vmatmul.f32.gmra.mxu0 %v43
  %v100 = vpop.f32.mrf.mxu0
  %v101 = vadd.f32 0.0, %v100
  %102 = vmatmul.f32.gmra.mxu0 %v46
  %v103 = vpop.f32.mrf.mxu0
  %v104 = vadd.f32 0.0, %v103
  %105 = vmatmul.f32.gmra.mxu0 %v49
  %v106 = vpop.f32.mrf.mxu0
  %v107 = vadd.f32 0.0, %v106
  %108 = vmatmul.f32.gmra.mxu0 %v52
  %v109 = vpop.f32.mrf.mxu0
  %v110 = vadd.f32 0.0, %v109
  %111 = vdwg.mxu0
  %p112 = scmp.eq.s32.totalorder 0, 0
  // Predicated region
  $region10: #{tpu_custom_call.1} parent=0 // pred_check
    %p113 = pneg %p112
  $region11: #{tpu_custom_call.1} parent=0 // pred_check_branch
    %115 = sbr.rel (%p113) target = $region13
  $region12: #{tpu_custom_call.1} parent=0 // pred_region
    %vm116 = vcmask 7168
    %117 = vst.msk [vmem:[%s2] sm:$0xff] %vm116, 0.0
    %118 = vst.msk [vmem:[%s2 + $0x8] sm:$0xff] %vm116, 0.0
    %119 = vst.msk [vmem:[%s2 + $0x10] sm:$0xff] %vm116, 0.0
    %120 = vst.msk [vmem:[%s2 + $0x18] sm:$0xff] %vm116, 0.0
  $region13: #{tpu_custom_call.1} parent=0 // pred_fallthru
    _
  %v121 = vld [vmem:[%s2] sm:$0xff]
  %v122 = vld [vmem:[%s2 + $0x8] sm:$0xff]
  %v123 = vld [vmem:[%s2 + $0x10] sm:$0xff]
  %v124 = vld [vmem:[%s2 + $0x18] sm:$0xff]
  %v125 = vmul.f32 %v72, %v72
  %v126 = vmul.f32 %v101, %v101
  %v127 = vmul.f32 %v75, %v75
  %v128 = vmul.f32 %v104, %v104
  %v129 = vmul.f32 %v78, %v78
  %v130 = vmul.f32 %v107, %v107
  %v131 = vmul.f32 %v81, %v81
  %v132 = vmul.f32 %v110, %v110
  %v133 = vadd.f32 %v125, %v126
  %134 = vadd.xlane.f32.xlu0 %v133
  %v135 = vpop.xlane.xlu0 %134
  %v136 = vadd.f32 %v127, %v128
  %137 = vadd.xlane.f32.xlu0 %v136
  %v138 = vpop.xlane.xlu0 %137
  %v139 = vadd.f32 %v129, %v130
  %140 = vadd.xlane.f32.xlu0 %v139
  %v141 = vpop.xlane.xlu0 %140
  %v142 = vadd.f32 %v131, %v132
  %143 = vadd.xlane.f32.xlu0 %v142
  %v144 = vpop.xlane.xlu0 %143
  %v145 = vadd.f32 %v121, %v135
  %v146 = vadd.f32 %v122, %v138
  %v147 = vadd.f32 %v123, %v141
  %v148 = vadd.f32 %v124, %v144
  %vm149 = vcmask 7168
  %150 = vst.msk [vmem:[%s2] sm:$0xff] %vm149, %v145
  %151 = vst.msk [vmem:[%s2 + $0x8] sm:$0xff] %vm149, %v146
  %152 = vst.msk [vmem:[%s2 + $0x10] sm:$0xff] %vm149, %v147
  %153 = vst.msk [vmem:[%s2 + $0x18] sm:$0xff] %vm149, %v148
  // Predicated region
  $region14: #{tpu_custom_call.1} parent=0 // pred_check
    _
  $region15: #{tpu_custom_call.1} parent=0 // pred_check_branch
    %155 = sbr.rel (0) target = $region17
  $region16: #{tpu_custom_call.1} parent=0 // pred_region
    _
  $region17: #{tpu_custom_call.1} parent=0 // pred_fallthru
    _
  // Predicated region
  $region18: #{tpu_custom_call.1} parent=0 // pred_check
    _
  $region19: #{tpu_custom_call.1} parent=0 // pred_check_branch
    %157 = sbr.rel (0) target = $region21
  $region20: #{tpu_custom_call.1} parent=0 // pred_region
    _
  $region21: #{tpu_custom_call.1} parent=0 // pred_fallthru
    _

</llo_original>
